<compile_context>
chip_gen: v6e
topology: v6e:2x2x1
jax: 0.10.0
libtpu: 0.0.40
codegen_flags: <defaults>
</compile_context>

<pallas_src>
import jax
import jax.numpy as jnp
from jax.experimental import pallas as pl
from jax.experimental.pallas import tpu as pltpu


def _const_spec(shape):
    """Full-array block, replicated to every grid step (weights / graph)."""
    return pl.BlockSpec(shape, lambda i: (0,) * len(shape))


# ----------------------------- fused kernel -------------------------------- #

def fused_forward_kernel(x_ref, a_ref,
                         w2_1_ref, b2_1_ref, w1_1_ref, b1_1_ref,
                         w2_2_ref, b2_2_ref, w1_2_ref, b1_2_ref,
                         wl_ref, bl_ref,
                         o_ref,
                         h2_scratch):
    """One row tile of the final output per grid step.

    conv1 and conv2.lin2 run over the FULL graph (needed because conv2's mean
    aggregation reads every node's h2); conv2's aggregation / lin1 and the
    final Linear are restricted to this tile's rows.  Grid steps are fully
    independent -> "parallel" megacore sharding is legal.
    """
    tm = o_ref.shape[0]
    row0 = pl.multiple_of(pl.program_id(0) * tm, tm)

    x = x_ref[...]
    a = a_ref[...]

    # ---------------- conv1 (full graph) ----------------
    h1 = jnp.dot(x, w2_1_ref[...], preferred_element_type=jnp.float32) + b2_1_ref[...]
    aggr1 = jnp.dot(a, h1, preferred_element_type=jnp.float32)        # mean aggr
    z1 = jnp.concatenate([h1, aggr1], axis=1)                          # (N, 2H1=128)
    y1 = jnp.maximum(
        jnp.dot(z1, w1_1_ref[...], preferred_element_type=jnp.float32) + b1_1_ref[...],
        0.0)

    # ---------------- conv2.lin2 (full graph, stashed in VMEM) ----------------
    h2_scratch[...] = (jnp.dot(y1, w2_2_ref[...], preferred_element_type=jnp.float32)
                       + b2_2_ref[...])

    # ---------- conv2 aggregation + lin1 + final Linear (this tile only) ------
    a_tile = a_ref[pl.ds(row0, tm), :]
    h2_tile = h2_scratch[pl.ds(row0, tm), :]
    aggr2 = jnp.dot(a_tile, h2_scratch[...], preferred_element_type=jnp.float32)
    z2 = jnp.concatenate([h2_tile, aggr2], axis=1)                     # (tm, 2H2)
    y2 = jnp.maximum(
        jnp.dot(z2, w1_2_ref[...], preferred_element_type=jnp.float32) + b1_2_ref[...],
        0.0)
    o_ref[...] = (jnp.dot(y2, wl_ref[...], preferred_element_type=jnp.float32)
                  + bl_ref[...])


# ------------------------------- wrapper ----------------------------------- #

def fae_featgraphconv_forward(x, a_norm, params, *, tm=8):
    (w2_1, b2_1, w1_1, b1_1,
     w2_2, b2_2, w1_2, b1_2,
     wl, bl) = params

    n = x.shape[0]
    assert n % tm == 0, "node count must be a multiple of the row tile"
    h2 = w2_2.shape[1]
    out_ch = wl.shape[1]

    # biases as (1, C) lane vectors
    b2_1 = b2_1.reshape(1, -1)
    b1_1 = b1_1.reshape(1, -1)
    b2_2 = b2_2.reshape(1, -1)
    b1_2 = b1_2.reshape(1, -1)
    bl = bl.reshape(1, -1)

    arrays = (x, a_norm,
              w2_1, b2_1, w1_1, b1_1,
              w2_2, b2_2, w1_2, b1_2,
              wl, bl)

    return pl.pallas_call(
        fused_forward_kernel,
        out_shape=jax.ShapeDtypeStruct((n, out_ch), jnp.float32),
        grid=(n // tm,),
        in_specs=[_const_spec(a.shape) for a in arrays],
        out_specs=pl.BlockSpec((tm, out_ch), lambda i: (i, 0)),
        scratch_shapes=[pltpu.VMEM((n, h2), jnp.float32)],
        compiler_params=pltpu.CompilerParams(
            dimension_semantics=("parallel",)),
    )(*arrays)


# -------------------------- graph preprocessing ---------------------------- #

def build_mean_adjacency(edge_index, num_nodes):
    """Dense row-normalized adjacency (PyG 'mean' aggregation + self loops).

    Edge (j -> i): edge_index[0] = source j, edge_index[1] = target i.
    add_remaining_self_loops -> A[i, i] = 1.  Row i divided by deg(i), so
    A_norm @ h == scatter_mean(h_j, i).
    """
    # TODO(synk): assumes no duplicate edges in edge_index (set semantics).
    src, dst = edge_index[0], edge_index[1]
    a = jnp.zeros((num_nodes, num_nodes), jnp.float32)
    a = a.at[dst, src].set(1.0)
    diag = jnp.arange(num_nodes)
    a = a.at[diag, diag].set(1.0)          # add_remaining_self_loops
    deg = jnp.sum(a, axis=1, keepdims=True)
    return a / deg


# ------------------------------ parameters --------------------------------- #

def init_linear(key, fan_in, fan_out):
    """Synthetic init mimicking torch.nn.Linear's uniform bounds; weight is
    returned already transposed to [in, out]."""
    kw, kb = jax.random.split(key)
    bound = 1.0 / float(fan_in) ** 0.5
    w = jax.random.uniform(kw, (fan_in, fan_out), jnp.float32, -bound, bound)
    b = jax.random.uniform(kb, (fan_out,), jnp.float32, -bound, bound)
    return w, b


# ------------------------------ reference ---------------------------------- #

def feat_conv_ref(x, a_norm, w2, b2, w1, b1):
    h = x @ w2 + b2
    aggr = a_norm @ h
    return jnp.maximum(jnp.concatenate([h, aggr], axis=1) @ w1 + b1, 0.0)


# --------------------------------- main ------------------------------------ #

if __name__ == "__main__":
    key = jax.random.PRNGKey(0)
    k_x, k11, k12, k21, k22, k3 = jax.random.split(key, 6)

    # opts.problem == 'Prediction'
    N, IN_CH = 16, 8
    H1, O1 = 64, 64     # conv1 = FeatGraphConv(in_channels, 64, 64)
    H2, O2 = 32, 32     # conv2 = FeatGraphConv(64, 32, 32)

    # node features and a simple bidirectional ring graph (no duplicate edges)
    x = jax.random.normal(k_x, (N, IN_CH), jnp.float32)
    src = jnp.arange(N)
    dst = (src + 1) % N
    edge_index = jnp.stack([jnp.concatenate([src, dst]),
                            jnp.concatenate([dst, src])]).astype(jnp.int32)

    a_norm = build_mean_adjacency(edge_index, N)

    # conv1: lin2 = Linear(IN_CH, 64), lin1 = Linear(2*64, 64)
    w2_1, b2_1 = init_linear(k11, IN_CH, H1)
    w1_1, b1_1 = init_linear(k12, 2 * H1, O1)
    # conv2: lin2 = Linear(64, 32), lin1 = Linear(2*32, 32)
    w2_2, b2_2 = init_linear(k21, O1, H2)
    w1_2, b1_2 = init_linear(k22, 2 * H2, O2)
    # final lin = Linear(32, 1)
    wl, bl = init_linear(k3, O2, 1)

    params = (w2_1, b2_1, w1_1, b1_1, w2_2, b2_2, w1_2, b1_2, wl, bl)

    # ---- fused Pallas forward (single kernel) ----
    out = fae_featgraphconv_forward(x, a_norm, params, tm=8)
    out = jax.block_until_ready(out)

    # ---- pure-JAX reference check ----
    r1 = feat_conv_ref(x, a_norm, w2_1, b2_1.reshape(1, -1), w1_1, b1_1.reshape(1, -1))
    r2 = feat_conv_ref(r1, a_norm, w2_2, b2_2.reshape(1, -1), w1_2, b1_2.reshape(1, -1))
    ref = r2 @ wl + bl.reshape(1, -1)

    assert out.shape == (N, 1)
    assert jnp.allclose(out, ref, atol=1e-4, rtol=1e-4)

    print("KERNEL_OK")
</pallas_src>

<mosaic_0001>
module attributes {stable_mosaic.version = 11 : i64} {
  func.func @fused_forward_kernel(%arg0: i32, %arg1: memref<16x8xf32, #tpu.memory_space<vmem>>, %arg2: memref<16x16xf32, #tpu.memory_space<vmem>>, %arg3: memref<8x64xf32, #tpu.memory_space<vmem>>, %arg4: memref<1x64xf32, #tpu.memory_space<vmem>>, %arg5: memref<128x64xf32, #tpu.memory_space<vmem>>, %arg6: memref<1x64xf32, #tpu.memory_space<vmem>>, %arg7: memref<64x32xf32, #tpu.memory_space<vmem>>, %arg8: memref<1x32xf32, #tpu.memory_space<vmem>>, %arg9: memref<64x32xf32, #tpu.memory_space<vmem>>, %arg10: memref<1x32xf32, #tpu.memory_space<vmem>>, %arg11: memref<32x1xf32, #tpu.memory_space<vmem>>, %arg12: memref<1x1xf32, #tpu.memory_space<vmem>>, %arg13: memref<8x1xf32, #tpu.memory_space<vmem>>, %arg14: memref<16x32xf32, #tpu.memory_space<vmem>>) attributes {dimension_semantics = [#tpu.dimension_semantics<parallel>], iteration_bounds = array<i64: 2>, scalar_prefetch = 0 : i64, scratch_operands = 1 : i64, tpu.core_type = #tpu.core_type<tc>, window_params = [{pipeline_mode = #tpu.pipeline_mode<synchronous>, transform_indices = @transform_0, window_bounds = array<i64: 16, 8>}, {pipeline_mode = #tpu.pipeline_mode<synchronous>, transform_indices = @transform_1, window_bounds = array<i64: 16, 16>}, {pipeline_mode = #tpu.pipeline_mode<synchronous>, transform_indices = @transform_2, window_bounds = array<i64: 8, 64>}, {pipeline_mode = #tpu.pipeline_mode<synchronous>, transform_indices = @transform_3, window_bounds = array<i64: 1, 64>}, {pipeline_mode = #tpu.pipeline_mode<synchronous>, transform_indices = @transform_4, window_bounds = array<i64: 128, 64>}, {pipeline_mode = #tpu.pipeline_mode<synchronous>, transform_indices = @transform_5, window_bounds = array<i64: 1, 64>}, {pipeline_mode = #tpu.pipeline_mode<synchronous>, transform_indices = @transform_6, window_bounds = array<i64: 64, 32>}, {pipeline_mode = #tpu.pipeline_mode<synchronous>, transform_indices = @transform_7, window_bounds = array<i64: 1, 32>}, {pipeline_mode = #tpu.pipeline_mode<synchronous>, transform_indices = @transform_8, window_bounds = array<i64: 64, 32>}, {pipeline_mode = #tpu.pipeline_mode<synchronous>, transform_indices = @transform_9, window_bounds = array<i64: 1, 32>}, {pipeline_mode = #tpu.pipeline_mode<synchronous>, transform_indices = @transform_10, window_bounds = array<i64: 32, 1>}, {pipeline_mode = #tpu.pipeline_mode<synchronous>, transform_indices = @transform_11, window_bounds = array<i64: 1, 1>}, {transform_indices = @transform_12, window_bounds = array<i64: 8, 1>}]} {
    %c8_i32 = arith.constant 8 : i32
    %0 = arith.muli %arg0, %c8_i32 : i32
    %1 = tpu.assume_multiple %0, 8 : i32
    %c0 = arith.constant 0 : index
    %c0_0 = arith.constant 0 : index
    %2 = vector.load %arg1[%c0, %c0_0] : memref<16x8xf32, #tpu.memory_space<vmem>>, vector<16x8xf32>
    %c0_1 = arith.constant 0 : index
    %c0_2 = arith.constant 0 : index
    %3 = vector.load %arg2[%c0_1, %c0_2] : memref<16x16xf32, #tpu.memory_space<vmem>>, vector<16x16xf32>
    %c0_3 = arith.constant 0 : index
    %c0_4 = arith.constant 0 : index
    %4 = vector.load %arg3[%c0_3, %c0_4] : memref<8x64xf32, #tpu.memory_space<vmem>>, vector<8x64xf32>
    %cst = arith.constant dense<0.000000e+00> : vector<16x64xf32>
    %5 = tpu.matmul %2, %4, %cst {dimension_numbers = #tpu.dot_dimension_numbers<[1], [0], [0], [1], [0, 0, 1, 1], [], []>} : vector<16x8xf32>, vector<8x64xf32>, vector<16x64xf32> -> vector<16x64xf32>
    %c0_5 = arith.constant 0 : index
    %c0_6 = arith.constant 0 : index
    %6 = vector.load %arg4[%c0_5, %c0_6] : memref<1x64xf32, #tpu.memory_space<vmem>>, vector<1x64xf32>
    %7 = vector.broadcast %6 : vector<1x64xf32> to vector<16x64xf32>
    %8 = arith.addf %5, %7 : vector<16x64xf32>
    %cst_7 = arith.constant dense<0.000000e+00> : vector<16x64xf32>
    %9 = tpu.matmul %3, %8, %cst_7 {dimension_numbers = #tpu.dot_dimension_numbers<[1], [0], [0], [1], [0, 0, 1, 1], [], []>} : vector<16x16xf32>, vector<16x64xf32>, vector<16x64xf32> -> vector<16x64xf32>
    %10 = tpu.concatenate %8, %9 in 1 : vector<16x64xf32>, vector<16x64xf32> -> vector<16x128xf32>
    %c0_8 = arith.constant 0 : index
    %c0_9 = arith.constant 0 : index
    %11 = vector.load %arg5[%c0_8, %c0_9] : memref<128x64xf32, #tpu.memory_space<vmem>>, vector<128x64xf32>
    %cst_10 = arith.constant dense<0.000000e+00> : vector<16x64xf32>
    %12 = tpu.matmul %10, %11, %cst_10 {dimension_numbers = #tpu.dot_dimension_numbers<[1], [0], [0], [1], [0, 0, 1, 1], [], []>} : vector<16x128xf32>, vector<128x64xf32>, vector<16x64xf32> -> vector<16x64xf32>
    %c0_11 = arith.constant 0 : index
    %c0_12 = arith.constant 0 : index
    %13 = vector.load %arg6[%c0_11, %c0_12] : memref<1x64xf32, #tpu.memory_space<vmem>>, vector<1x64xf32>
    %14 = vector.broadcast %13 : vector<1x64xf32> to vector<16x64xf32>
    %15 = arith.addf %12, %14 : vector<16x64xf32>
    %cst_13 = arith.constant 0.000000e+00 : f32
    %16 = vector.broadcast %cst_13 : f32 to vector<16x64xf32>
    %17 = arith.maximumf %15, %16 : vector<16x64xf32>
    %c0_14 = arith.constant 0 : index
    %c0_15 = arith.constant 0 : index
    %18 = vector.load %arg7[%c0_14, %c0_15] : memref<64x32xf32, #tpu.memory_space<vmem>>, vector<64x32xf32>
    %cst_16 = arith.constant dense<0.000000e+00> : vector<16x32xf32>
    %19 = tpu.matmul %17, %18, %cst_16 {dimension_numbers = #tpu.dot_dimension_numbers<[1], [0], [0], [1], [0, 0, 1, 1], [], []>} : vector<16x64xf32>, vector<64x32xf32>, vector<16x32xf32> -> vector<16x32xf32>
    %c0_17 = arith.constant 0 : index
    %c0_18 = arith.constant 0 : index
    %20 = vector.load %arg8[%c0_17, %c0_18] : memref<1x32xf32, #tpu.memory_space<vmem>>, vector<1x32xf32>
    %21 = vector.broadcast %20 : vector<1x32xf32> to vector<16x32xf32>
    %22 = arith.addf %19, %21 : vector<16x32xf32>
    %c0_19 = arith.constant 0 : index
    %c0_20 = arith.constant 0 : index
    %23 = vector.load %arg14[%c0_19, %c0_20] : memref<16x32xf32, #tpu.memory_space<vmem>>, vector<16x32xf32>
    tpu.vector_store %arg14[%c0_19, %c0_20], %22 {strides = array<i32>} : memref<16x32xf32, #tpu.memory_space<vmem>>, vector<16x32xf32>,
    %24 = arith.index_cast %1 : i32 to index
    %c0_21 = arith.constant 0 : index
    %25 = vector.load %arg2[%24, %c0_21] : memref<16x16xf32, #tpu.memory_space<vmem>>, vector<8x16xf32>
    %26 = arith.index_cast %1 : i32 to index
    %c0_22 = arith.constant 0 : index
    %27 = vector.load %arg14[%26, %c0_22] : memref<16x32xf32, #tpu.memory_space<vmem>>, vector<8x32xf32>
    %c0_23 = arith.constant 0 : index
    %c0_24 = arith.constant 0 : index
    %28 = vector.load %arg14[%c0_23, %c0_24] : memref<16x32xf32, #tpu.memory_space<vmem>>, vector<16x32xf32>
    %cst_25 = arith.constant dense<0.000000e+00> : vector<8x32xf32>
    %29 = tpu.matmul %25, %28, %cst_25 {dimension_numbers = #tpu.dot_dimension_numbers<[1], [0], [0], [1], [0, 0, 1, 1], [], []>} : vector<8x16xf32>, vector<16x32xf32>, vector<8x32xf32> -> vector<8x32xf32>
    %30 = tpu.concatenate %27, %29 in 1 : vector<8x32xf32>, vector<8x32xf32> -> vector<8x64xf32>
    %c0_26 = arith.constant 0 : index
    %c0_27 = arith.constant 0 : index
    %31 = vector.load %arg9[%c0_26, %c0_27] : memref<64x32xf32, #tpu.memory_space<vmem>>, vector<64x32xf32>
    %cst_28 = arith.constant dense<0.000000e+00> : vector<8x32xf32>
    %32 = tpu.matmul %30, %31, %cst_28 {dimension_numbers = #tpu.dot_dimension_numbers<[1], [0], [0], [1], [0, 0, 1, 1], [], []>} : vector<8x64xf32>, vector<64x32xf32>, vector<8x32xf32> -> vector<8x32xf32>
    %c0_29 = arith.constant 0 : index
    %c0_30 = arith.constant 0 : index
    %33 = vector.load %arg10[%c0_29, %c0_30] : memref<1x32xf32, #tpu.memory_space<vmem>>, vector<1x32xf32>
    %34 = vector.broadcast %33 : vector<1x32xf32> to vector<8x32xf32>
    %35 = arith.addf %32, %34 : vector<8x32xf32>
    %cst_31 = arith.constant 0.000000e+00 : f32
    %36 = vector.broadcast %cst_31 : f32 to vector<8x32xf32>
    %37 = arith.maximumf %35, %36 : vector<8x32xf32>
    %c0_32 = arith.constant 0 : index
    %c0_33 = arith.constant 0 : index
    %38 = vector.load %arg11[%c0_32, %c0_33] : memref<32x1xf32, #tpu.memory_space<vmem>>, vector<32x1xf32>
    %cst_34 = arith.constant dense<0.000000e+00> : vector<8x1xf32>
    %39 = tpu.matmul %37, %38, %cst_34 {dimension_numbers = #tpu.dot_dimension_numbers<[1], [0], [0], [1], [0, 0, 1, 1], [], []>} : vector<8x32xf32>, vector<32x1xf32>, vector<8x1xf32> -> vector<8x1xf32>
    %c0_35 = arith.constant 0 : index
    %c0_36 = arith.constant 0 : index
    %40 = vector.load %arg12[%c0_35, %c0_36] : memref<1x1xf32, #tpu.memory_space<vmem>>, vector<1x1xf32>
    %41 = vector.broadcast %40 : vector<1x1xf32> to vector<8x1xf32>
    %42 = arith.addf %39, %41 : vector<8x1xf32>
    %c0_37 = arith.constant 0 : index
    %c0_38 = arith.constant 0 : index
    %43 = vector.load %arg13[%c0_37, %c0_38] : memref<8x1xf32, #tpu.memory_space<vmem>>, vector<8x1xf32>
    tpu.vector_store %arg13[%c0_37, %c0_38], %42 {strides = array<i32>} : memref<8x1xf32, #tpu.memory_space<vmem>>, vector<8x1xf32>,
    return
  }
  func.func @transform_0(%arg0: i32) -> (i32, i32) {
    %c0_i32 = arith.constant 0 : i32
    %c0_i32_0 = arith.constant 0 : i32
    %c0_i32_1 = arith.constant 0 : i32
    return %c0_i32, %c0_i32_0 : i32, i32
  }
  func.func @transform_1(%arg0: i32) -> (i32, i32) {
    %c0_i32 = arith.constant 0 : i32
    %c0_i32_0 = arith.constant 0 : i32
    %c0_i32_1 = arith.constant 0 : i32
    return %c0_i32, %c0_i32_0 : i32, i32
  }
  func.func @transform_2(%arg0: i32) -> (i32, i32) {
    %c0_i32 = arith.constant 0 : i32
    %c0_i32_0 = arith.constant 0 : i32
    %c0_i32_1 = arith.constant 0 : i32
    return %c0_i32, %c0_i32_0 : i32, i32
  }
  func.func @transform_3(%arg0: i32) -> (i32, i32) {
    %c0_i32 = arith.constant 0 : i32
    %c0_i32_0 = arith.constant 0 : i32
    %c0_i32_1 = arith.constant 0 : i32
    return %c0_i32, %c0_i32_0 : i32, i32
  }
  func.func @transform_4(%arg0: i32) -> (i32, i32) {
    %c0_i32 = arith.constant 0 : i32
    %c0_i32_0 = arith.constant 0 : i32
    %c0_i32_1 = arith.constant 0 : i32
    return %c0_i32, %c0_i32_0 : i32, i32
  }
  func.func @transform_5(%arg0: i32) -> (i32, i32) {
    %c0_i32 = arith.constant 0 : i32
    %c0_i32_0 = arith.constant 0 : i32
    %c0_i32_1 = arith.constant 0 : i32
    return %c0_i32, %c0_i32_0 : i32, i32
  }
  func.func @transform_6(%arg0: i32) -> (i32, i32) {
    %c0_i32 = arith.constant 0 : i32
    %c0_i32_0 = arith.constant 0 : i32
    %c0_i32_1 = arith.constant 0 : i32
    return %c0_i32, %c0_i32_0 : i32, i32
  }
  func.func @transform_7(%arg0: i32) -> (i32, i32) {
    %c0_i32 = arith.constant 0 : i32
    %c0_i32_0 = arith.constant 0 : i32
    %c0_i32_1 = arith.constant 0 : i32
    return %c0_i32, %c0_i32_0 : i32, i32
  }
  func.func @transform_8(%arg0: i32) -> (i32, i32) {
    %c0_i32 = arith.constant 0 : i32
    %c0_i32_0 = arith.constant 0 : i32
    %c0_i32_1 = arith.constant 0 : i32
    return %c0_i32, %c0_i32_0 : i32, i32
  }
  func.func @transform_9(%arg0: i32) -> (i32, i32) {
    %c0_i32 = arith.constant 0 : i32
    %c0_i32_0 = arith.constant 0 : i32
    %c0_i32_1 = arith.constant 0 : i32
    return %c0_i32, %c0_i32_0 : i32, i32
  }
  func.func @transform_10(%arg0: i32) -> (i32, i32) {
    %c0_i32 = arith.constant 0 : i32
    %c0_i32_0 = arith.constant 0 : i32
    %c0_i32_1 = arith.constant 0 : i32
    return %c0_i32, %c0_i32_0 : i32, i32
  }
  func.func @transform_11(%arg0: i32) -> (i32, i32) {
    %c0_i32 = arith.constant 0 : i32
    %c0_i32_0 = arith.constant 0 : i32
    %c0_i32_1 = arith.constant 0 : i32
    return %c0_i32, %c0_i32_0 : i32, i32
  }
  func.func @transform_12(%arg0: i32) -> (i32, i32) {
    %c0_i32 = arith.constant 0 : i32
    %c0_i32_0 = arith.constant 0 : i32
    return %arg0, %c0_i32 : i32, i32
  }
}

</mosaic_0001>

<llo_original>
// kernel: tpu_custom_call.1
$region0: #{tpu_custom_call.1}
  #allocation0 [shape = 'u32[]', space=smem, size = 0x4, offset = 0x4, fixed_abs, tag = 'smem constant byte address 0x4 - core index']
  #allocation1 [shape = 'u32[144,128]{1,0:T(1,128)}', space=vmem, size = 0x12000, scoped, tag = 'internal scratch']
  #allocation2 [shape = 'f32[16,32]{1,0:T(8,128)}', space=vmem, size = 0x2000, scoped, tag = 'scratch operand']
  #allocation3 [shape = 'f32[1,1]{1,0:T(1,128)S(1)}', space=vmem, size = 0x200, scoped, tag = 'scoped memory for tpu_custom_call.1']
  %s0 = inlined_call_operand.vmem [shape: f32[16,8], index: 0, kind: input, shape index: {}]
  %s1 = inlined_call_operand.vmem [shape: f32[16,16], index: 1, kind: input, shape index: {}]
  %s2 = inlined_call_operand.vmem [shape: f32[8,64], index: 2, kind: input, shape index: {}]
  %s3 = inlined_call_operand.vmem [shape: f32[1,64], index: 3, kind: input, shape index: {}]
  %s4 = inlined_call_operand.vmem [shape: f32[128,64], index: 4, kind: input, shape index: {}]
  %s5 = inlined_call_operand.vmem [shape: f32[1,64], index: 5, kind: input, shape index: {}]
  %s6 = inlined_call_operand.vmem [shape: f32[64,32], index: 6, kind: input, shape index: {}]
  %s7 = inlined_call_operand.vmem [shape: f32[1,32], index: 7, kind: input, shape index: {}]
  %s8 = inlined_call_operand.vmem [shape: f32[64,32], index: 8, kind: input, shape index: {}]
  %s9 = inlined_call_operand.vmem [shape: f32[1,32], index: 9, kind: input, shape index: {}]
  %s10 = inlined_call_operand.vmem [shape: f32[32,1], index: 10, kind: input, shape index: {}]
  %s11 = inlined_call_operand.<no memory space> [shape: f32[1,1], index: 11, kind: input, shape index: {}]
  %s12 = inlined_call_operand.vmem [shape: f32[16,1], index: 12, kind: output, shape index: {}]
  %s13 = sld [smem:[#allocation0]]
  $region81: #{tpu_custom_call.1} parent=0
    _
  %s15 = ssub.s32 1, %s13
  %s16 = scalar_select 0, %s15, %s13
  %v17 = vstv %s11
  %18 = vst [vmem:[#allocation3] sm:$0x1] %v17
  loop: start=0, step=1, limit=4
  $region2: #{tpu_custom_call.1} parent=0 // loop_pre_header
    _
  $region3: #{tpu_custom_call.1} parent=0 // loop_header
    %s20 = sphi 0, %s24
    %p21 = scmp.ge.s32.totalorder %s20, 4
    %s28 = sphi 0, %s28
    %s30 = sphi 0, %s28
    %s31 = sphi 0, %s30
    %s45 = sphi 0, %s31
    %s49 = sphi 0, %s49
    %s51 = sphi 0, %s49
    %s52 = sphi 0, %s51
    %s66 = sphi 0, %s52
    %s70 = sphi 0, %s70
    %s72 = sphi 0, %s70
    %s73 = sphi 0, %s72
    %s87 = sphi 0, %s73
    %s91 = sphi 0, %s91
    %s93 = sphi 0, %s91
    %s94 = sphi 0, %s93
    %s108 = sphi 0, %s94
    %s112 = sphi 0, %s112
    %s114 = sphi 0, %s112
    %s115 = sphi 0, %s114
    %s129 = sphi 0, %s115
    %s133 = sphi 0, %s133
    %s135 = sphi 0, %s133
    %s136 = sphi 0, %s135
    %s150 = sphi 0, %s136
    %s154 = sphi 0, %s154
    %s156 = sphi 0, %s154
    %s157 = sphi 0, %s156
    %s171 = sphi 0, %s157
    %s175 = sphi 0, %s175
    %s177 = sphi 0, %s175
    %s178 = sphi 0, %s177
    %s192 = sphi 0, %s178
    %s196 = sphi 0, %s196
    %s198 = sphi 0, %s196
    %s199 = sphi 0, %s198
    %s213 = sphi 0, %s199
    %s217 = sphi 0, %s217
    %s219 = sphi 0, %s217
    %s220 = sphi 0, %s219
    %s234 = sphi 0, %s220
    %s238 = sphi 0, %s238
    %s240 = sphi 0, %s238
    %s241 = sphi 0, %s240
    %s255 = sphi 0, %s241
    %s259 = sphi 0, %s259
    %s261 = sphi 0, %s259
    %s262 = sphi 0, %s261
    %s276 = sphi 0, %s262
    %s282 = sphi 0, %s284
    %s285 = sphi 0, %s282
    %s286 = sphi 0, %s285
    %s302 = sphi 0, %s286
  $region4: #{tpu_custom_call.1} parent=0 // loop_header_branch
    %23 = sbr.rel (%p21) target = $region8
  $region5: #{tpu_custom_call.1} parent=0 // loop_body
    %s25 = ssub.s32 %s20, 1
    %s26 = ssub.s32 %s20, 2
    %s27 = sadd.s32 %s20, 1
    %s29 = sadd.s32 %s28, 1
    %p32 = scmp.eq.s32.totalorder %s20, 1
    %p33 = scmp.ne.s32.totalorder %s28, %s30
    %p34 = scmp.eq.s32.totalorder %s20, 0
    %p35 = por %p33, %p34
    %p36 = scmp.ne.s32.totalorder %s28, %s30
    %p37 = scmp.eq.s32.totalorder %s25, 1
    %p38 = por %p36, %p37
    %p39 = scmp.ne.s32.totalorder %s30, %s31
    %p40 = scmp.eq.s32.totalorder %s25, 0
    %p41 = por %p39, %p40
    %p42 = scmp.ne.s32.totalorder %s30, %s31
    %p43 = scmp.eq.s32.totalorder %s26, 1
    %p44 = por %p42, %p43
    %p46 = scmp.ne.s32.totalorder %s31, %s45
    %p47 = scmp.eq.s32.totalorder %s26, 0
    %p48 = por %p46, %p47
    %s50 = sadd.s32 %s49, 1
    %p53 = scmp.eq.s32.totalorder %s20, 1
    %p54 = scmp.ne.s32.totalorder %s49, %s51
    %p55 = scmp.eq.s32.totalorder %s20, 0
    %p56 = por %p54, %p55
    %p57 = scmp.ne.s32.totalorder %s49, %s51
    %p58 = scmp.eq.s32.totalorder %s25, 1
    %p59 = por %p57, %p58
    %p60 = scmp.ne.s32.totalorder %s51, %s52
    %p61 = scmp.eq.s32.totalorder %s25, 0
    %p62 = por %p60, %p61
    %p63 = scmp.ne.s32.totalorder %s51, %s52
    %p64 = scmp.eq.s32.totalorder %s26, 1
    %p65 = por %p63, %p64
    %p67 = scmp.ne.s32.totalorder %s52, %s66
    %p68 = scmp.eq.s32.totalorder %s26, 0
    %p69 = por %p67, %p68
    %s71 = sadd.s32 %s70, 1
    %p74 = scmp.eq.s32.totalorder %s20, 1
    %p75 = scmp.ne.s32.totalorder %s70, %s72
    %p76 = scmp.eq.s32.totalorder %s20, 0
    %p77 = por %p75, %p76
    %p78 = scmp.ne.s32.totalorder %s70, %s72
    %p79 = scmp.eq.s32.totalorder %s25, 1
    %p80 = por %p78, %p79
    %p81 = scmp.ne.s32.totalorder %s72, %s73
    %p82 = scmp.eq.s32.totalorder %s25, 0
    %p83 = por %p81, %p82
    %p84 = scmp.ne.s32.totalorder %s72, %s73
    %p85 = scmp.eq.s32.totalorder %s26, 1
    %p86 = por %p84, %p85
    %p88 = scmp.ne.s32.totalorder %s73, %s87
    %p89 = scmp.eq.s32.totalorder %s26, 0
    %p90 = por %p88, %p89
    %s92 = sadd.s32 %s91, 1
    %p95 = scmp.eq.s32.totalorder %s20, 1
    %p96 = scmp.ne.s32.totalorder %s91, %s93
    %p97 = scmp.eq.s32.totalorder %s20, 0
    %p98 = por %p96, %p97
    %p99 = scmp.ne.s32.totalorder %s91, %s93
    %p100 = scmp.eq.s32.totalorder %s25, 1
    %p101 = por %p99, %p100
    %p102 = scmp.ne.s32.totalorder %s93, %s94
    %p103 = scmp.eq.s32.totalorder %s25, 0
    %p104 = por %p102, %p103
    %p105 = scmp.ne.s32.totalorder %s93, %s94
    %p106 = scmp.eq.s32.totalorder %s26, 1
    %p107 = por %p105, %p106
    %p109 = scmp.ne.s32.totalorder %s94, %s108
    %p110 = scmp.eq.s32.totalorder %s26, 0
    %p111 = por %p109, %p110
    %s113 = sadd.s32 %s112, 1
    %p116 = scmp.eq.s32.totalorder %s20, 1
    %p117 = scmp.ne.s32.totalorder %s112, %s114
    %p118 = scmp.eq.s32.totalorder %s20, 0
    %p119 = por %p117, %p118
    %p120 = scmp.ne.s32.totalorder %s112, %s114
    %p121 = scmp.eq.s32.totalorder %s25, 1
    %p122 = por %p120, %p121
    %p123 = scmp.ne.s32.totalorder %s114, %s115
    %p124 = scmp.eq.s32.totalorder %s25, 0
    %p125 = por %p123, %p124
    %p126 = scmp.ne.s32.totalorder %s114, %s115
    %p127 = scmp.eq.s32.totalorder %s26, 1
    %p128 = por %p126, %p127
    %p130 = scmp.ne.s32.totalorder %s115, %s129
    %p131 = scmp.eq.s32.totalorder %s26, 0
    %p132 = por %p130, %p131
    %s134 = sadd.s32 %s133, 1
    %p137 = scmp.eq.s32.totalorder %s20, 1
    %p138 = scmp.ne.s32.totalorder %s133, %s135
    %p139 = scmp.eq.s32.totalorder %s20, 0
    %p140 = por %p138, %p139
    %p141 = scmp.ne.s32.totalorder %s133, %s135
    %p142 = scmp.eq.s32.totalorder %s25, 1
    %p143 = por %p141, %p142
    %p144 = scmp.ne.s32.totalorder %s135, %s136
    %p145 = scmp.eq.s32.totalorder %s25, 0
    %p146 = por %p144, %p145
    %p147 = scmp.ne.s32.totalorder %s135, %s136
    %p148 = scmp.eq.s32.totalorder %s26, 1
    %p149 = por %p147, %p148
    %p151 = scmp.ne.s32.totalorder %s136, %s150
    %p152 = scmp.eq.s32.totalorder %s26, 0
    %p153 = por %p151, %p152
    %s155 = sadd.s32 %s154, 1
    %p158 = scmp.eq.s32.totalorder %s20, 1
    %p159 = scmp.ne.s32.totalorder %s154, %s156
    %p160 = scmp.eq.s32.totalorder %s20, 0
    %p161 = por %p159, %p160
    %p162 = scmp.ne.s32.totalorder %s154, %s156
    %p163 = scmp.eq.s32.totalorder %s25, 1
    %p164 = por %p162, %p163
    %p165 = scmp.ne.s32.totalorder %s156, %s157
    %p166 = scmp.eq.s32.totalorder %s25, 0
    %p167 = por %p165, %p166
    %p168 = scmp.ne.s32.totalorder %s156, %s157
    %p169 = scmp.eq.s32.totalorder %s26, 1
    %p170 = por %p168, %p169
    %p172 = scmp.ne.s32.totalorder %s157, %s171
    %p173 = scmp.eq.s32.totalorder %s26, 0
    %p174 = por %p172, %p173
    %s176 = sadd.s32 %s175, 1
    %p179 = scmp.eq.s32.totalorder %s20, 1
    %p180 = scmp.ne.s32.totalorder %s175, %s177
    %p181 = scmp.eq.s32.totalorder %s20, 0
    %p182 = por %p180, %p181
    %p183 = scmp.ne.s32.totalorder %s175, %s177
    %p184 = scmp.eq.s32.totalorder %s25, 1
    %p185 = por %p183, %p184
    %p186 = scmp.ne.s32.totalorder %s177, %s178
    %p187 = scmp.eq.s32.totalorder %s25, 0
    %p188 = por %p186, %p187
    %p189 = scmp.ne.s32.totalorder %s177, %s178
    %p190 = scmp.eq.s32.totalorder %s26, 1
    %p191 = por %p189, %p190
    %p193 = scmp.ne.s32.totalorder %s178, %s192
    %p194 = scmp.eq.s32.totalorder %s26, 0
    %p195 = por %p193, %p194
    %s197 = sadd.s32 %s196, 1
    %p200 = scmp.eq.s32.totalorder %s20, 1
    %p201 = scmp.ne.s32.totalorder %s196, %s198
    %p202 = scmp.eq.s32.totalorder %s20, 0
    %p203 = por %p201, %p202
    %p204 = scmp.ne.s32.totalorder %s196, %s198
    %p205 = scmp.eq.s32.totalorder %s25, 1
    %p206 = por %p204, %p205
    %p207 = scmp.ne.s32.totalorder %s198, %s199
    %p208 = scmp.eq.s32.totalorder %s25, 0
    %p209 = por %p207, %p208
    %p210 = scmp.ne.s32.totalorder %s198, %s199
    %p211 = scmp.eq.s32.totalorder %s26, 1
    %p212 = por %p210, %p211
    %p214 = scmp.ne.s32.totalorder %s199, %s213
    %p215 = scmp.eq.s32.totalorder %s26, 0
    %p216 = por %p214, %p215
    %s218 = sadd.s32 %s217, 1
    %p221 = scmp.eq.s32.totalorder %s20, 1
    %p222 = scmp.ne.s32.totalorder %s217, %s219
    %p223 = scmp.eq.s32.totalorder %s20, 0
    %p224 = por %p222, %p223
    %p225 = scmp.ne.s32.totalorder %s217, %s219
    %p226 = scmp.eq.s32.totalorder %s25, 1
    %p227 = por %p225, %p226
    %p228 = scmp.ne.s32.totalorder %s219, %s220
    %p229 = scmp.eq.s32.totalorder %s25, 0
    %p230 = por %p228, %p229
    %p231 = scmp.ne.s32.totalorder %s219, %s220
    %p232 = scmp.eq.s32.totalorder %s26, 1
    %p233 = por %p231, %p232
    %p235 = scmp.ne.s32.totalorder %s220, %s234
    %p236 = scmp.eq.s32.totalorder %s26, 0
    %p237 = por %p235, %p236
    %s239 = sadd.s32 %s238, 1
    %p242 = scmp.eq.s32.totalorder %s20, 1
    %p243 = scmp.ne.s32.totalorder %s238, %s240
    %p244 = scmp.eq.s32.totalorder %s20, 0
    %p245 = por %p243, %p244
    %p246 = scmp.ne.s32.totalorder %s238, %s240
    %p247 = scmp.eq.s32.totalorder %s25, 1
    %p248 = por %p246, %p247
    %p249 = scmp.ne.s32.totalorder %s240, %s241
    %p250 = scmp.eq.s32.totalorder %s25, 0
    %p251 = por %p249, %p250
    %p252 = scmp.ne.s32.totalorder %s240, %s241
    %p253 = scmp.eq.s32.totalorder %s26, 1
    %p254 = por %p252, %p253
    %p256 = scmp.ne.s32.totalorder %s241, %s255
    %p257 = scmp.eq.s32.totalorder %s26, 0
    %p258 = por %p256, %p257
    %s260 = sadd.s32 %s259, 1
    %p263 = scmp.eq.s32.totalorder %s20, 1
    %p264 = scmp.ne.s32.totalorder %s259, %s261
    %p265 = scmp.eq.s32.totalorder %s20, 0
    %p266 = por %p264, %p265
    %p267 = scmp.ne.s32.totalorder %s259, %s261
    %p268 = scmp.eq.s32.totalorder %s25, 1
    %p269 = por %p267, %p268
    %p270 = scmp.ne.s32.totalorder %s261, %s262
    %p271 = scmp.eq.s32.totalorder %s25, 0
    %p272 = por %p270, %p271
    %p273 = scmp.ne.s32.totalorder %s261, %s262
    %p274 = scmp.eq.s32.totalorder %s26, 1
    %p275 = por %p273, %p274
    %p277 = scmp.ne.s32.totalorder %s262, %s276
    %p278 = scmp.eq.s32.totalorder %s26, 0
    %p279 = por %p277, %p278
    %s280 = ssub.s32 %s20, %s27
    %p281 = scmp.eq.s32.totalorder %s280, 0
    %s283 = sadd.s32 %s282, 1
    %s284 = scalar_select %p281, %s282, %s283
    %p287 = pneg %p281
    %p288 = scmp.eq.s32.totalorder %s20, 1
    %p289 = por %p287, %p288
    %p290 = scmp.ne.s32.totalorder %s282, %s285
    %p291 = scmp.eq.s32.totalorder %s20, 0
    %p292 = por %p290, %p291
    %p293 = scmp.ne.s32.totalorder %s282, %s285
    %p294 = scmp.eq.s32.totalorder %s25, 1
    %p295 = por %p293, %p294
    %p296 = scmp.ne.s32.totalorder %s285, %s286
    %p297 = scmp.eq.s32.totalorder %s25, 0
    %p298 = por %p296, %p297
    %p299 = scmp.ne.s32.totalorder %s285, %s286
    %p300 = scmp.eq.s32.totalorder %s26, 1
    %p301 = por %p299, %p300
    %p303 = scmp.ne.s32.totalorder %s286, %s302
    %p304 = scmp.eq.s32.totalorder %s26, 0
    %p305 = por %p303, %p304
    %p306 = scmp.le.s32.totalorder 1, %s20
    %p307 = scmp.lt.s32.totalorder %s20, 3
    %p308 = pnand %p306, %p307
    %p309 = pneg %p308
    // Predicated region
    $region9: #{tpu_custom_call.1} parent=5 // pred_check
      _
    $region10: #{tpu_custom_call.1} parent=5 // pred_check_branch
      %311 = sbr.rel (%p308) target = $region12
    $region11: #{tpu_custom_call.1} parent=5 // pred_region
      %s312 = ssub.s32 %s20, 1
      // Predicated region
      $region13: #{tpu_custom_call.1} parent=11 // pred_check
        %p313 = pneg %p41
      $region14: #{tpu_custom_call.1} parent=11 // pred_check_branch
        %315 = sbr.rel (%p313) target = $region16
      $region15: #{tpu_custom_call.1} parent=11 // pred_region
        _
      $region16: #{tpu_custom_call.1} parent=11 // pred_fallthru
        _
      // Predicated region
      $region17: #{tpu_custom_call.1} parent=11 // pred_check
        %p316 = pneg %p62
      $region18: #{tpu_custom_call.1} parent=11 // pred_check_branch
        %318 = sbr.rel (%p316) target = $region20
      $region19: #{tpu_custom_call.1} parent=11 // pred_region
        _
      $region20: #{tpu_custom_call.1} parent=11 // pred_fallthru
        _
      // Predicated region
      $region21: #{tpu_custom_call.1} parent=11 // pred_check
        %p319 = pneg %p83
      $region22: #{tpu_custom_call.1} parent=11 // pred_check_branch
        %321 = sbr.rel (%p319) target = $region24
      $region23: #{tpu_custom_call.1} parent=11 // pred_region
        _
      $region24: #{tpu_custom_call.1} parent=11 // pred_fallthru
        _
      // Predicated region
      $region25: #{tpu_custom_call.1} parent=11 // pred_check
        %p322 = pneg %p104
      $region26: #{tpu_custom_call.1} parent=11 // pred_check_branch
        %324 = sbr.rel (%p322) target = $region28
      $region27: #{tpu_custom_call.1} parent=11 // pred_region
        _
      $region28: #{tpu_custom_call.1} parent=11 // pred_fallthru
        _
      // Predicated region
      $region29: #{tpu_custom_call.1} parent=11 // pred_check
        %p325 = pneg %p125
      $region30: #{tpu_custom_call.1} parent=11 // pred_check_branch
        %327 = sbr.rel (%p325) target = $region32
      $region31: #{tpu_custom_call.1} parent=11 // pred_region
        _
      $region32: #{tpu_custom_call.1} parent=11 // pred_fallthru
        _
      // Predicated region
      $region33: #{tpu_custom_call.1} parent=11 // pred_check
        %p328 = pneg %p146
      $region34: #{tpu_custom_call.1} parent=11 // pred_check_branch
        %330 = sbr.rel (%p328) target = $region36
      $region35: #{tpu_custom_call.1} parent=11 // pred_region
        _
      $region36: #{tpu_custom_call.1} parent=11 // pred_fallthru
        _
      // Predicated region
      $region37: #{tpu_custom_call.1} parent=11 // pred_check
        %p331 = pneg %p167
      $region38: #{tpu_custom_call.1} parent=11 // pred_check_branch
        %333 = sbr.rel (%p331) target = $region40
      $region39: #{tpu_custom_call.1} parent=11 // pred_region
        _
      $region40: #{tpu_custom_call.1} parent=11 // pred_fallthru
        _
      // Predicated region
      $region41: #{tpu_custom_call.1} parent=11 // pred_check
        %p334 = pneg %p188
      $region42: #{tpu_custom_call.1} parent=11 // pred_check_branch
        %336 = sbr.rel (%p334) target = $region44
      $region43: #{tpu_custom_call.1} parent=11 // pred_region
        _
      $region44: #{tpu_custom_call.1} parent=11 // pred_fallthru
        _
      // Predicated region
      $region45: #{tpu_custom_call.1} parent=11 // pred_check
        %p337 = pneg %p209
      $region46: #{tpu_custom_call.1} parent=11 // pred_check_branch
        %339 = sbr.rel (%p337) target = $region48
      $region47: #{tpu_custom_call.1} parent=11 // pred_region
        _
      $region48: #{tpu_custom_call.1} parent=11 // pred_fallthru
        _
      // Predicated region
      $region49: #{tpu_custom_call.1} parent=11 // pred_check
        %p340 = pneg %p230
      $region50: #{tpu_custom_call.1} parent=11 // pred_check_branch
        %342 = sbr.rel (%p340) target = $region52
      $region51: #{tpu_custom_call.1} parent=11 // pred_region
        _
      $region52: #{tpu_custom_call.1} parent=11 // pred_fallthru
        _
      // Predicated region
      $region53: #{tpu_custom_call.1} parent=11 // pred_check
        %p343 = pneg %p251
      $region54: #{tpu_custom_call.1} parent=11 // pred_check_branch
        %345 = sbr.rel (%p343) target = $region56
      $region55: #{tpu_custom_call.1} parent=11 // pred_region
        _
      $region56: #{tpu_custom_call.1} parent=11 // pred_fallthru
        _
      // Predicated region
      $region57: #{tpu_custom_call.1} parent=11 // pred_check
        %p346 = pneg %p272
      $region58: #{tpu_custom_call.1} parent=11 // pred_check_branch
        %348 = sbr.rel (%p346) target = $region60
      $region59: #{tpu_custom_call.1} parent=11 // pred_region
        _
      $region60: #{tpu_custom_call.1} parent=11 // pred_fallthru
        _
    $region12: #{tpu_custom_call.1} parent=5 // pred_fallthru
      _
    %p349 = scmp.lt.s32.totalorder %s20, 2
    // Predicated region
    $region61: #{tpu_custom_call.1} parent=5 // pred_check
      %p350 = pneg %p349
    $region62: #{tpu_custom_call.1} parent=5 // pred_check_branch
      %352 = sbr.rel (%p350) target = $region64
    $region63: #{tpu_custom_call.1} parent=5 // pred_region
      _
    $region64: #{tpu_custom_call.1} parent=5 // pred_fallthru
      _
    %p353 = scmp.le.s32.totalorder 1, %s20
    %p354 = scmp.lt.s32.totalorder %s20, 3
    %p355 = pnand %p353, %p354
    %p356 = pneg %p355
    // Predicated region
    $region65: #{tpu_custom_call.1} parent=5 // pred_check
      _
    $region66: #{tpu_custom_call.1} parent=5 // pred_check_branch
      %358 = sbr.rel (%p355) target = $region68
    $region67: #{tpu_custom_call.1} parent=5 // pred_region
      %s359 = ssub.s32 %s20, 1
      %p360 = pneg %p41
      %p361 = pneg %p38
      %p362 = pneg %p62
      %p363 = pneg %p59
      %p364 = pneg %p83
      %p365 = pneg %p80
      %p366 = pneg %p104
      %p367 = pneg %p101
      %p368 = pneg %p125
      %p369 = pneg %p122
      %p370 = pneg %p146
      %p371 = pneg %p143
      %p372 = pneg %p167
      %p373 = pneg %p164
      %p374 = pneg %p188
      %p375 = pneg %p185
      %p376 = pneg %p209
      %p377 = pneg %p206
      %p378 = pneg %p230
      %p379 = pneg %p227
      %p380 = pneg %p251
      %p381 = pneg %p248
      %p382 = pneg %p272
      %p383 = pneg %p269
      %p384 = pneg %p298
      %p385 = pneg %p295
      %p386 = scmp.lt.s32.totalorder %s25, 1
      %s387 = scalar_select %p386, %s25, 1
      %s388 = smul.addr %s387, 8
      %s389 = scalar_lea.vmem %s12, %s388
      %p390 = scmp.lt.s32.totalorder %s25, 1
      %s391 = scalar_select %p390, %s25, 1
      %s392 = smul.addr %s391, 8
      %s393 = scalar_lea.vmem %s12, %s392
      %s394 = smul.u32 %s25, 8
      %v395 = vld [vmem:[%s0] sm:$0xff]
      %v396 = vld [vmem:[%s0 + $0x8] sm:$0xff]
      %v397 = vld [vmem:[%s1] sm:$0xff]
      %v398 = vld [vmem:[%s1 + $0x8] sm:$0xff]
      %v399 = vld [vmem:[%s2] sm:$0xff]
      %v400 = vld [vmem:[%s3] sm:$0x1]
      %v402 = vlaneseq
      %v403 = vshrl.u32 %v402, 7
      %v404 = vsub.s32 0, %v403
      %v405 = vrot.slane %v400, %v404
      %vm407 = vcmask 64512
      %v409 = vsel %vm407, %v395, 0
      %v412 = vsel %vm407, %v396, 0
      %414 = vmatprep.subr.mxu0 0.0
      %415 = vmatpush1.msra.mxu0 0.0
      %416 = vmatprep.subr.mxu0 0.0
      %417 = vmatpush1.msra.mxu0 0.0
      %418 = vmatprep.subr.mxu0 0.0
      %419 = vmatpush1.msra.mxu0 0.0
      %420 = vmatprep.subr.mxu0 0.0
      %421 = vmatpush1.msra.mxu0 0.0
      %422 = vmatprep.subr.mxu0 0.0
      %423 = vmatpush1.msra.mxu0 0.0
      %424 = vmatprep.subr.mxu0 0.0
      %425 = vmatpush1.msra.mxu0 0.0
      %426 = vmatprep.subr.mxu0 0.0
      %427 = vmatpush1.msra.mxu0 0.0
      %428 = vmatprep.subr.mxu0 0.0
      %429 = vmatpush1.msra.mxu0 0.0
      %430 = vmatprep.subr.mxu0 0.0
      %431 = vmatpush1.msra.mxu0 0.0
      %432 = vmatprep.subr.mxu0 0.0
      %433 = vmatpush1.msra.mxu0 0.0
      %434 = vmatprep.subr.mxu0 0.0
      %435 = vmatpush1.msra.mxu0 0.0
      %436 = vmatprep.subr.mxu0 0.0
      %437 = vmatpush1.msra.mxu0 0.0
      %438 = vmatprep.subr.mxu0 0.0
      %439 = vmatpush1.msra.mxu0 0.0
      %440 = vmatprep.subr.mxu0 0.0
      %441 = vmatpush1.msra.mxu0 0.0
      %442 = vmatprep.subr.mxu0 0.0
      %443 = vmatpush1.msra.mxu0 0.0
      %444 = vmatprep.subr.mxu0 0.0
      %445 = vmatpush1.msra.mxu0 %v399
      %446 = vmatprep.subr.mxu0 0.0
      %447 = vmatpush2.msra.mxu0 0.0
      %448 = vmatprep.subr.mxu0 0.0
      %449 = vmatpush2.msra.mxu0 0.0
      %450 = vmatprep.subr.mxu0 0.0
      %451 = vmatpush2.msra.mxu0 0.0
      %452 = vmatprep.subr.mxu0 0.0
      %453 = vmatpush2.msra.mxu0 0.0
      %454 = vmatprep.subr.mxu0 0.0
      %455 = vmatpush2.msra.mxu0 0.0
      %456 = vmatprep.subr.mxu0 0.0
      %457 = vmatpush2.msra.mxu0 0.0
      %458 = vmatprep.subr.mxu0 0.0
      %459 = vmatpush2.msra.mxu0 0.0
      %460 = vmatprep.subr.mxu0 0.0
      %461 = vmatpush2.msra.mxu0 0.0
      %462 = vmatprep.subr.mxu0 0.0
      %463 = vmatpush2.msra.mxu0 0.0
      %464 = vmatprep.subr.mxu0 0.0
      %465 = vmatpush2.msra.mxu0 0.0
      %466 = vmatprep.subr.mxu0 0.0
      %467 = vmatpush2.msra.mxu0 0.0
      %468 = vmatprep.subr.mxu0 0.0
      %469 = vmatpush2.msra.mxu0 0.0
      %470 = vmatprep.subr.mxu0 0.0
      %471 = vmatpush2.msra.mxu0 0.0
      %472 = vmatprep.subr.mxu0 0.0
      %473 = vmatpush2.msra.mxu0 0.0
      %474 = vmatprep.subr.mxu0 0.0
      %475 = vmatpush2.msra.mxu0 0.0
      %476 = vmatprep.subr.mxu0 0.0
      %477 = vmatpush2.msra.mxu0 0.0
      %478 = vmatprep.mubr.f32.mxu0 0.0
      %479 = vmatmul.mubr.f32.gmra.mxu0 %v409
      %v480 = vpop.f32.mrf.mxu0
      %v481 = vadd.f32 %v405, %v480
      %v482 = vpop.f32.mrf.mxu0
      %483 = vmatprep.mubr.f32.mxu0 0.0
      %484 = vmatmul.mubr.f32.gmra.mxu0 %v412
      %v485 = vpop.f32.mrf.mxu0
      %v486 = vadd.f32 %v405, %v485
      %v487 = vpop.f32.mrf.mxu0
      %488 = vdwg.mxu0
      %vm489 = vcmask 130048
      %v491 = vsel %vm489, %v397, 0
      %v494 = vsel %vm489, %v398, 0
      %496 = vmatprep.subr.mxu0 0.0
      %497 = vmatpush1.msra.mxu0 0.0
      %498 = vmatprep.subr.mxu0 0.0
      %499 = vmatpush1.msra.mxu0 0.0
      %500 = vmatprep.subr.mxu0 0.0
      %501 = vmatpush1.msra.mxu0 0.0
      %502 = vmatprep.subr.mxu0 0.0
      %503 = vmatpush1.msra.mxu0 0.0
      %504 = vmatprep.subr.mxu0 0.0
      %505 = vmatpush1.msra.mxu0 0.0
      %506 = vmatprep.subr.mxu0 0.0
      %507 = vmatpush1.msra.mxu0 0.0
      %508 = vmatprep.subr.mxu0 0.0
      %509 = vmatpush1.msra.mxu0 0.0
      %510 = vmatprep.subr.mxu0 0.0
      %511 = vmatpush1.msra.mxu0 0.0
      %512 = vmatprep.subr.mxu0 0.0
      %513 = vmatpush1.msra.mxu0 0.0
      %514 = vmatprep.subr.mxu0 0.0
      %515 = vmatpush1.msra.mxu0 0.0
      %516 = vmatprep.subr.mxu0 0.0
      %517 = vmatpush1.msra.mxu0 0.0
      %518 = vmatprep.subr.mxu0 0.0
      %519 = vmatpush1.msra.mxu0 0.0
      %520 = vmatprep.subr.mxu0 0.0
      %521 = vmatpush1.msra.mxu0 0.0
      %522 = vmatprep.subr.mxu0 0.0
      %523 = vmatpush1.msra.mxu0 0.0
      %524 = vmatprep.subr.mxu0 0.0
      %525 = vmatpush1.msra.mxu0 %v486
      %526 = vmatprep.subr.mxu0 0.0
      %527 = vmatpush1.msra.mxu0 %v481
      %528 = vmatprep.subr.mxu0 0.0
      %529 = vmatpush2.msra.mxu0 0.0
      %530 = vmatprep.subr.mxu0 0.0
      %531 = vmatpush2.msra.mxu0 0.0
      %532 = vmatprep.subr.mxu0 0.0
      %533 = vmatpush2.msra.mxu0 0.0
      %534 = vmatprep.subr.mxu0 0.0
      %535 = vmatpush2.msra.mxu0 0.0
      %536 = vmatprep.subr.mxu0 0.0
      %537 = vmatpush2.msra.mxu0 0.0
      %538 = vmatprep.subr.mxu0 0.0
      %539 = vmatpush2.msra.mxu0 0.0
      %540 = vmatprep.subr.mxu0 0.0
      %541 = vmatpush2.msra.mxu0 0.0
      %542 = vmatprep.subr.mxu0 0.0
      %543 = vmatpush2.msra.mxu0 0.0
      %544 = vmatprep.subr.mxu0 0.0
      %545 = vmatpush2.msra.mxu0 0.0
      %546 = vmatprep.subr.mxu0 0.0
      %547 = vmatpush2.msra.mxu0 0.0
      %548 = vmatprep.subr.mxu0 0.0
      %549 = vmatpush2.msra.mxu0 0.0
      %550 = vmatprep.subr.mxu0 0.0
      %551 = vmatpush2.msra.mxu0 0.0
      %552 = vmatprep.subr.mxu0 0.0
      %553 = vmatpush2.msra.mxu0 0.0
      %554 = vmatprep.subr.mxu0 0.0
      %555 = vmatpush2.msra.mxu0 0.0
      %556 = vmatprep.subr.mxu0 0.0
      %557 = vmatpush2.msra.mxu0 0.0
      %558 = vmatprep.subr.mxu0 0.0
      %559 = vmatpush2.msra.mxu0 0.0
      %560 = vmatprep.mubr.f32.mxu0 0.0
      %561 = vmatmul.mubr.f32.gmra.mxu0 %v491
      %v562 = vpop.f32.mrf.mxu0
      %v563 = vadd.f32 0.0, %v562
      %v564 = vpop.f32.mrf.mxu0
      %565 = vmatprep.mubr.f32.mxu0 0.0
      %566 = vmatmul.mubr.f32.gmra.mxu0 %v494
      %v567 = vpop.f32.mrf.mxu0
      %v568 = vadd.f32 0.0, %v567
      %v569 = vpop.f32.mrf.mxu0
      %570 = vdwg.mxu0
      %573 = vrot.lane.b32.xlu0 %v563, 64
      %v574 = vpop.permute.xlu0 %573
      %575 = vrot.lane.b32.xlu0 %v568, 64
      %v576 = vpop.permute.xlu0 %575
      %vm579 = vcmask 523264
      %v580 = vsel %vm579, %v481, %v574
      %v581 = vsel %vm579, %v486, %v576
      %v582 = vld [vmem:[%s4] sm:$0xff]
      %v583 = vld [vmem:[%s4 + $0x8] sm:$0xff]
      %v584 = vld [vmem:[%s4 + $0x10] sm:$0xff]
      %v585 = vld [vmem:[%s4 + $0x18] sm:$0xff]
      %v586 = vld [vmem:[%s4 + $0x20] sm:$0xff]
      %v587 = vld [vmem:[%s4 + $0x28] sm:$0xff]
      %v588 = vld [vmem:[%s4 + $0x30] sm:$0xff]
      %v589 = vld [vmem:[%s4 + $0x38] sm:$0xff]
      %v590 = vld [vmem:[%s4 + $0x40] sm:$0xff]
      %v591 = vld [vmem:[%s4 + $0x48] sm:$0xff]
      %v592 = vld [vmem:[%s4 + $0x50] sm:$0xff]
      %v593 = vld [vmem:[%s4 + $0x58] sm:$0xff]
      %v594 = vld [vmem:[%s4 + $0x60] sm:$0xff]
      %v595 = vld [vmem:[%s4 + $0x68] sm:$0xff]
      %v596 = vld [vmem:[%s4 + $0x70] sm:$0xff]
      %v597 = vld [vmem:[%s4 + $0x78] sm:$0xff]
      %v598 = vld [vmem:[%s5] sm:$0x1]
      %v600 = vlaneseq
      %v601 = vshrl.u32 %v600, 7
      %v602 = vsub.s32 0, %v601
      %v603 = vrot.slane %v598, %v602
      %605 = vmatprep.subr.mxu0 0.0
      %606 = vmatpush1.msra.mxu0 %v597
      %607 = vmatprep.subr.mxu0 0.0
      %608 = vmatpush1.msra.mxu0 %v596
      %609 = vmatprep.subr.mxu0 0.0
      %610 = vmatpush1.msra.mxu0 %v595
      %611 = vmatprep.subr.mxu0 0.0
      %612 = vmatpush1.msra.mxu0 %v594
      %613 = vmatprep.subr.mxu0 0.0
      %614 = vmatpush1.msra.mxu0 %v593
      %615 = vmatprep.subr.mxu0 0.0
      %616 = vmatpush1.msra.mxu0 %v592
      %617 = vmatprep.subr.mxu0 0.0
      %618 = vmatpush1.msra.mxu0 %v591
      %619 = vmatprep.subr.mxu0 0.0
      %620 = vmatpush1.msra.mxu0 %v590
      %621 = vmatprep.subr.mxu0 0.0
      %622 = vmatpush1.msra.mxu0 %v589
      %623 = vmatprep.subr.mxu0 0.0
      %624 = vmatpush1.msra.mxu0 %v588
      %625 = vmatprep.subr.mxu0 0.0
      %626 = vmatpush1.msra.mxu0 %v587
      %627 = vmatprep.subr.mxu0 0.0
      %628 = vmatpush1.msra.mxu0 %v586
      %629 = vmatprep.subr.mxu0 0.0
      %630 = vmatpush1.msra.mxu0 %v585
      %631 = vmatprep.subr.mxu0 0.0
      %632 = vmatpush1.msra.mxu0 %v584
      %633 = vmatprep.subr.mxu0 0.0
      %634 = vmatpush1.msra.mxu0 %v583
      %635 = vmatprep.subr.mxu0 0.0
      %636 = vmatpush1.msra.mxu0 %v582
      %637 = vmatprep.subr.mxu0 0.0
      %638 = vmatpush2.msra.mxu0 0.0
      %639 = vmatprep.subr.mxu0 0.0
      %640 = vmatpush2.msra.mxu0 0.0
      %641 = vmatprep.subr.mxu0 0.0
      %642 = vmatpush2.msra.mxu0 0.0
      %643 = vmatprep.subr.mxu0 0.0
      %644 = vmatpush2.msra.mxu0 0.0
      %645 = vmatprep.subr.mxu0 0.0
      %646 = vmatpush2.msra.mxu0 0.0
      %647 = vmatprep.subr.mxu0 0.0
      %648 = vmatpush2.msra.mxu0 0.0
      %649 = vmatprep.subr.mxu0 0.0
      %650 = vmatpush2.msra.mxu0 0.0
      %651 = vmatprep.subr.mxu0 0.0
      %652 = vmatpush2.msra.mxu0 0.0
      %653 = vmatprep.subr.mxu0 0.0
      %654 = vmatpush2.msra.mxu0 0.0
      %655 = vmatprep.subr.mxu0 0.0
      %656 = vmatpush2.msra.mxu0 0.0
      %657 = vmatprep.subr.mxu0 0.0
      %658 = vmatpush2.msra.mxu0 0.0
      %659 = vmatprep.subr.mxu0 0.0
      %660 = vmatpush2.msra.mxu0 0.0
      %661 = vmatprep.subr.mxu0 0.0
      %662 = vmatpush2.msra.mxu0 0.0
      %663 = vmatprep.subr.mxu0 0.0
      %664 = vmatpush2.msra.mxu0 0.0
      %665 = vmatprep.subr.mxu0 0.0
      %666 = vmatpush2.msra.mxu0 0.0
      %667 = vmatprep.subr.mxu0 0.0
      %668 = vmatpush2.msra.mxu0 0.0
      %669 = vmatprep.mubr.f32.mxu0 0.0
      %670 = vmatmul.mubr.f32.gmra.mxu0 %v580
      %v671 = vpop.f32.mrf.mxu0
      %v672 = vadd.f32 %v603, %v671
      %v673 = vpop.f32.mrf.mxu0
      %674 = vmatprep.mubr.f32.mxu0 0.0
      %675 = vmatmul.mubr.f32.gmra.mxu0 %v581
      %v676 = vpop.f32.mrf.mxu0
      %v677 = vadd.f32 %v603, %v676
      %v678 = vpop.f32.mrf.mxu0
      %679 = vdwg.mxu0
      %v680 = vmax.f32 %v672, 0.0
      %v681 = vmax.f32 %v677, 0.0
      %v682 = vld [vmem:[%s6] sm:$0xff]
      %v683 = vld [vmem:[%s6 + $0x8] sm:$0xff]
      %v684 = vld [vmem:[%s6 + $0x10] sm:$0xff]
      %v685 = vld [vmem:[%s6 + $0x18] sm:$0xff]
      %v686 = vld [vmem:[%s6 + $0x20] sm:$0xff]
      %v687 = vld [vmem:[%s6 + $0x28] sm:$0xff]
      %v688 = vld [vmem:[%s6 + $0x30] sm:$0xff]
      %v689 = vld [vmem:[%s6 + $0x38] sm:$0xff]
      %v690 = vld [vmem:[%s7] sm:$0x1]
      %v692 = vlaneseq
      %v693 = vshrl.u32 %v692, 7
      %v694 = vsub.s32 0, %v693
      %v695 = vrot.slane %v690, %v694
      %v698 = vsel %vm579, %v680, 0
      %v701 = vsel %vm579, %v681, 0
      %703 = vmatprep.subr.mxu0 0.0
      %704 = vmatpush1.msra.mxu0 0.0
      %705 = vmatprep.subr.mxu0 0.0
      %706 = vmatpush1.msra.mxu0 0.0
      %707 = vmatprep.subr.mxu0 0.0
      %708 = vmatpush1.msra.mxu0 0.0
      %709 = vmatprep.subr.mxu0 0.0
      %710 = vmatpush1.msra.mxu0 0.0
      %711 = vmatprep.subr.mxu0 0.0
      %712 = vmatpush1.msra.mxu0 0.0
      %713 = vmatprep.subr.mxu0 0.0
      %714 = vmatpush1.msra.mxu0 0.0
      %715 = vmatprep.subr.mxu0 0.0
      %716 = vmatpush1.msra.mxu0 0.0
      %717 = vmatprep.subr.mxu0 0.0
      %718 = vmatpush1.msra.mxu0 0.0
      %719 = vmatprep.subr.mxu0 0.0
      %720 = vmatpush1.msra.mxu0 %v689
      %721 = vmatprep.subr.mxu0 0.0
      %722 = vmatpush1.msra.mxu0 %v688
      %723 = vmatprep.subr.mxu0 0.0
      %724 = vmatpush1.msra.mxu0 %v687
      %725 = vmatprep.subr.mxu0 0.0
      %726 = vmatpush1.msra.mxu0 %v686
      %727 = vmatprep.subr.mxu0 0.0
      %728 = vmatpush1.msra.mxu0 %v685
      %729 = vmatprep.subr.mxu0 0.0
      %730 = vmatpush1.msra.mxu0 %v684
      %731 = vmatprep.subr.mxu0 0.0
      %732 = vmatpush1.msra.mxu0 %v683
      %733 = vmatprep.subr.mxu0 0.0
      %734 = vmatpush1.msra.mxu0 %v682
      %735 = vmatprep.subr.mxu0 0.0
      %736 = vmatpush2.msra.mxu0 0.0
      %737 = vmatprep.subr.mxu0 0.0
      %738 = vmatpush2.msra.mxu0 0.0
      %739 = vmatprep.subr.mxu0 0.0
      %740 = vmatpush2.msra.mxu0 0.0
      %741 = vmatprep.subr.mxu0 0.0
      %742 = vmatpush2.msra.mxu0 0.0
      %743 = vmatprep.subr.mxu0 0.0
      %744 = vmatpush2.msra.mxu0 0.0
      %745 = vmatprep.subr.mxu0 0.0
      %746 = vmatpush2.msra.mxu0 0.0
      %747 = vmatprep.subr.mxu0 0.0
      %748 = vmatpush2.msra.mxu0 0.0
      %749 = vmatprep.subr.mxu0 0.0
      %750 = vmatpush2.msra.mxu0 0.0
      %751 = vmatprep.subr.mxu0 0.0
      %752 = vmatpush2.msra.mxu0 0.0
      %753 = vmatprep.subr.mxu0 0.0
      %754 = vmatpush2.msra.mxu0 0.0
      %755 = vmatprep.subr.mxu0 0.0
      %756 = vmatpush2.msra.mxu0 0.0
      %757 = vmatprep.subr.mxu0 0.0
      %758 = vmatpush2.msra.mxu0 0.0
      %759 = vmatprep.subr.mxu0 0.0
      %760 = vmatpush2.msra.mxu0 0.0
      %761 = vmatprep.subr.mxu0 0.0
      %762 = vmatpush2.msra.mxu0 0.0
      %763 = vmatprep.subr.mxu0 0.0
      %764 = vmatpush2.msra.mxu0 0.0
      %765 = vmatprep.subr.mxu0 0.0
      %766 = vmatpush2.msra.mxu0 0.0
      %767 = vmatprep.mubr.f32.mxu0 0.0
      %768 = vmatmul.mubr.f32.gmra.mxu0 %v698
      %v769 = vpop.f32.mrf.mxu0
      %v770 = vadd.f32 %v695, %v769
      %v771 = vpop.f32.mrf.mxu0
      %772 = vmatprep.mubr.f32.mxu0 0.0
      %773 = vmatmul.mubr.f32.gmra.mxu0 %v701
      %v774 = vpop.f32.mrf.mxu0
      %v775 = vadd.f32 %v695, %v774
      %v776 = vpop.f32.mrf.mxu0
      %777 = vdwg.mxu0
      %vm778 = vcmask 261120
      %779 = vst.msk [vmem:[#allocation2] sm:$0xff] %vm778, %v770
      %780 = vst.msk [vmem:[#allocation2 + $0x8] sm:$0xff] %vm778, %v775
      %s781 = scalar_lea.vmem %s1, %s394
      %v782 = vld [vmem:[%s781] sm:$0xff]
      %s783 = scalar_lea.vmem [#allocation2], %s394
      %v784 = vld [vmem:[%s783] sm:$0xff]
      %v785 = vld [vmem:[#allocation2] sm:$0xff]
      %v786 = vld [vmem:[#allocation2 + $0x8] sm:$0xff]
      %v788 = vsel %vm489, %v782, 0
      %790 = vmatprep.subr.mxu0 0.0
      %791 = vmatpush1.msra.mxu0 0.0
      %792 = vmatprep.subr.mxu0 0.0
      %793 = vmatpush1.msra.mxu0 0.0
      %794 = vmatprep.subr.mxu0 0.0
      %795 = vmatpush1.msra.mxu0 0.0
      %796 = vmatprep.subr.mxu0 0.0
      %797 = vmatpush1.msra.mxu0 0.0
      %798 = vmatprep.subr.mxu0 0.0
      %799 = vmatpush1.msra.mxu0 0.0
      %800 = vmatprep.subr.mxu0 0.0
      %801 = vmatpush1.msra.mxu0 0.0
      %802 = vmatprep.subr.mxu0 0.0
      %803 = vmatpush1.msra.mxu0 0.0
      %804 = vmatprep.subr.mxu0 0.0
      %805 = vmatpush1.msra.mxu0 0.0
      %806 = vmatprep.subr.mxu0 0.0
      %807 = vmatpush1.msra.mxu0 0.0
      %808 = vmatprep.subr.mxu0 0.0
      %809 = vmatpush1.msra.mxu0 0.0
      %810 = vmatprep.subr.mxu0 0.0
      %811 = vmatpush1.msra.mxu0 0.0
      %812 = vmatprep.subr.mxu0 0.0
      %813 = vmatpush1.msra.mxu0 0.0
      %814 = vmatprep.subr.mxu0 0.0
      %815 = vmatpush1.msra.mxu0 0.0
      %816 = vmatprep.subr.mxu0 0.0
      %817 = vmatpush1.msra.mxu0 0.0
      %818 = vmatprep.subr.mxu0 0.0
      %819 = vmatpush1.msra.mxu0 %v786
      %820 = vmatprep.subr.mxu0 0.0
      %821 = vmatpush1.msra.mxu0 %v785
      %822 = vmatprep.subr.mxu0 0.0
      %823 = vmatpush2.msra.mxu0 0.0
      %824 = vmatprep.subr.mxu0 0.0
      %825 = vmatpush2.msra.mxu0 0.0
      %826 = vmatprep.subr.mxu0 0.0
      %827 = vmatpush2.msra.mxu0 0.0
      %828 = vmatprep.subr.mxu0 0.0
      %829 = vmatpush2.msra.mxu0 0.0
      %830 = vmatprep.subr.mxu0 0.0
      %831 = vmatpush2.msra.mxu0 0.0
      %832 = vmatprep.subr.mxu0 0.0
      %833 = vmatpush2.msra.mxu0 0.0
      %834 = vmatprep.subr.mxu0 0.0
      %835 = vmatpush2.msra.mxu0 0.0
      %836 = vmatprep.subr.mxu0 0.0
      %837 = vmatpush2.msra.mxu0 0.0
      %838 = vmatprep.subr.mxu0 0.0
      %839 = vmatpush2.msra.mxu0 0.0
      %840 = vmatprep.subr.mxu0 0.0
      %841 = vmatpush2.msra.mxu0 0.0
      %842 = vmatprep.subr.mxu0 0.0
      %843 = vmatpush2.msra.mxu0 0.0
      %844 = vmatprep.subr.mxu0 0.0
      %845 = vmatpush2.msra.mxu0 0.0
      %846 = vmatprep.subr.mxu0 0.0
      %847 = vmatpush2.msra.mxu0 0.0
      %848 = vmatprep.subr.mxu0 0.0
      %849 = vmatpush2.msra.mxu0 0.0
      %850 = vmatprep.subr.mxu0 0.0
      %851 = vmatpush2.msra.mxu0 0.0
      %852 = vmatprep.subr.mxu0 0.0
      %853 = vmatpush2.msra.mxu0 0.0
      %854 = vmatprep.mubr.f32.mxu0 0.0
      %855 = vmatmul.mubr.f32.gmra.mxu0 %v788
      %v856 = vpop.f32.mrf.mxu0
      %v857 = vadd.f32 0.0, %v856
      %v858 = vpop.f32.mrf.mxu0
      %859 = vdwg.mxu0
      %861 = vrot.lane.b32.xlu0 %v857, 32
      %v862 = vpop.permute.xlu0 %861
      %v864 = vsel %vm778, %v784, %v862
      %v865 = vld [vmem:[%s8] sm:$0xff]
      %v866 = vld [vmem:[%s8 + $0x8] sm:$0xff]
      %v867 = vld [vmem:[%s8 + $0x10] sm:$0xff]
      %v868 = vld [vmem:[%s8 + $0x18] sm:$0xff]
      %v869 = vld [vmem:[%s8 + $0x20] sm:$0xff]
      %v870 = vld [vmem:[%s8 + $0x28] sm:$0xff]
      %v871 = vld [vmem:[%s8 + $0x30] sm:$0xff]
      %v872 = vld [vmem:[%s8 + $0x38] sm:$0xff]
      %v873 = vld [vmem:[%s9] sm:$0x1]
      %v875 = vlaneseq
      %v876 = vshrl.u32 %v875, 7
      %v877 = vsub.s32 0, %v876
      %v878 = vrot.slane %v873, %v877
      %v881 = vsel %vm579, %v864, 0
      %883 = vmatprep.subr.mxu0 0.0
      %884 = vmatpush1.msra.mxu0 0.0
      %885 = vmatprep.subr.mxu0 0.0
      %886 = vmatpush1.msra.mxu0 0.0
      %887 = vmatprep.subr.mxu0 0.0
      %888 = vmatpush1.msra.mxu0 0.0
      %889 = vmatprep.subr.mxu0 0.0
      %890 = vmatpush1.msra.mxu0 0.0
      %891 = vmatprep.subr.mxu0 0.0
      %892 = vmatpush1.msra.mxu0 0.0
      %893 = vmatprep.subr.mxu0 0.0
      %894 = vmatpush1.msra.mxu0 0.0
      %895 = vmatprep.subr.mxu0 0.0
      %896 = vmatpush1.msra.mxu0 0.0
      %897 = vmatprep.subr.mxu0 0.0
      %898 = vmatpush1.msra.mxu0 0.0
      %899 = vmatprep.subr.mxu0 0.0
      %900 = vmatpush1.msra.mxu0 %v872
      %901 = vmatprep.subr.mxu0 0.0
      %902 = vmatpush1.msra.mxu0 %v871
      %903 = vmatprep.subr.mxu0 0.0
      %904 = vmatpush1.msra.mxu0 %v870
      %905 = vmatprep.subr.mxu0 0.0
      %906 = vmatpush1.msra.mxu0 %v869
      %907 = vmatprep.subr.mxu0 0.0
      %908 = vmatpush1.msra.mxu0 %v868
      %909 = vmatprep.subr.mxu0 0.0
      %910 = vmatpush1.msra.mxu0 %v867
      %911 = vmatprep.subr.mxu0 0.0
      %912 = vmatpush1.msra.mxu0 %v866
      %913 = vmatprep.subr.mxu0 0.0
      %914 = vmatpush1.msra.mxu0 %v865
      %915 = vmatprep.subr.mxu0 0.0
      %916 = vmatpush2.msra.mxu0 0.0
      %917 = vmatprep.subr.mxu0 0.0
      %918 = vmatpush2.msra.mxu0 0.0
      %919 = vmatprep.subr.mxu0 0.0
      %920 = vmatpush2.msra.mxu0 0.0
      %921 = vmatprep.subr.mxu0 0.0
      %922 = vmatpush2.msra.mxu0 0.0
      %923 = vmatprep.subr.mxu0 0.0
      %924 = vmatpush2.msra.mxu0 0.0
      %925 = vmatprep.subr.mxu0 0.0
      %926 = vmatpush2.msra.mxu0 0.0
      %927 = vmatprep.subr.mxu0 0.0
      %928 = vmatpush2.msra.mxu0 0.0
      %929 = vmatprep.subr.mxu0 0.0
      %930 = vmatpush2.msra.mxu0 0.0
      %931 = vmatprep.subr.mxu0 0.0
      %932 = vmatpush2.msra.mxu0 0.0
      %933 = vmatprep.subr.mxu0 0.0
      %934 = vmatpush2.msra.mxu0 0.0
      %935 = vmatprep.subr.mxu0 0.0
      %936 = vmatpush2.msra.mxu0 0.0
      %937 = vmatprep.subr.mxu0 0.0
      %938 = vmatpush2.msra.mxu0 0.0
      %939 = vmatprep.subr.mxu0 0.0
      %940 = vmatpush2.msra.mxu0 0.0
      %941 = vmatprep.subr.mxu0 0.0
      %942 = vmatpush2.msra.mxu0 0.0
      %943 = vmatprep.subr.mxu0 0.0
      %944 = vmatpush2.msra.mxu0 0.0
      %945 = vmatprep.subr.mxu0 0.0
      %946 = vmatpush2.msra.mxu0 0.0
      %947 = vmatprep.mubr.f32.mxu0 0.0
      %948 = vmatmul.mubr.f32.gmra.mxu0 %v881
      %v949 = vpop.f32.mrf.mxu0
      %v950 = vadd.f32 %v878, %v949
      %v951 = vpop.f32.mrf.mxu0
      %952 = vdwg.mxu0
      %v953 = vmax.f32 %v950, 0.0
      %v954 = vld [vmem:[%s10] sm:$0xff]
      %v955 = vld [vmem:[%s10 + $0x8] sm:$0xff]
      %v956 = vld [vmem:[%s10 + $0x10] sm:$0xff]
      %v957 = vld [vmem:[%s10 + $0x18] sm:$0xff]
      %v958 = vld [vmem:[#allocation3] sm:$0x1]
      %v960 = vlaneseq
      %v961 = vshrl.u32 %v960, 7
      %v962 = vsub.s32 0, %v961
      %v963 = vrot.slane %v958, %v962
      %v966 = vsel %vm778, %v953, 0
      %968 = vmatprep.subr.mxu0 0.0
      %969 = vmatpush1.msra.mxu0 0.0
      %970 = vmatprep.subr.mxu0 0.0
      %971 = vmatpush1.msra.mxu0 0.0
      %972 = vmatprep.subr.mxu0 0.0
      %973 = vmatpush1.msra.mxu0 0.0
      %974 = vmatprep.subr.mxu0 0.0
      %975 = vmatpush1.msra.mxu0 0.0
      %976 = vmatprep.subr.mxu0 0.0
      %977 = vmatpush1.msra.mxu0 0.0
      %978 = vmatprep.subr.mxu0 0.0
      %979 = vmatpush1.msra.mxu0 0.0
      %980 = vmatprep.subr.mxu0 0.0
      %981 = vmatpush1.msra.mxu0 0.0
      %982 = vmatprep.subr.mxu0 0.0
      %983 = vmatpush1.msra.mxu0 0.0
      %984 = vmatprep.subr.mxu0 0.0
      %985 = vmatpush1.msra.mxu0 0.0
      %986 = vmatprep.subr.mxu0 0.0
      %987 = vmatpush1.msra.mxu0 0.0
      %988 = vmatprep.subr.mxu0 0.0
      %989 = vmatpush1.msra.mxu0 0.0
      %990 = vmatprep.subr.mxu0 0.0
      %991 = vmatpush1.msra.mxu0 0.0
      %992 = vmatprep.subr.mxu0 0.0
      %993 = vmatpush1.msra.mxu0 %v957
      %994 = vmatprep.subr.mxu0 0.0
      %995 = vmatpush1.msra.mxu0 %v956
      %996 = vmatprep.subr.mxu0 0.0
      %997 = vmatpush1.msra.mxu0 %v955
      %998 = vmatprep.subr.mxu0 0.0
      %999 = vmatpush1.msra.mxu0 %v954
      %1000 = vmatprep.subr.mxu0 0.0
      %1001 = vmatpush2.msra.mxu0 0.0
      %1002 = vmatprep.subr.mxu0 0.0
      %1003 = vmatpush2.msra.mxu0 0.0
      %1004 = vmatprep.subr.mxu0 0.0
      %1005 = vmatpush2.msra.mxu0 0.0
      %1006 = vmatprep.subr.mxu0 0.0
      %1007 = vmatpush2.msra.mxu0 0.0
      %1008 = vmatprep.subr.mxu0 0.0
      %1009 = vmatpush2.msra.mxu0 0.0
      %1010 = vmatprep.subr.mxu0 0.0
      %1011 = vmatpush2.msra.mxu0 0.0
      %1012 = vmatprep.subr.mxu0 0.0
      %1013 = vmatpush2.msra.mxu0 0.0
      %1014 = vmatprep.subr.mxu0 0.0
      %1015 = vmatpush2.msra.mxu0 0.0
      %1016 = vmatprep.subr.mxu0 0.0
      %1017 = vmatpush2.msra.mxu0 0.0
      %1018 = vmatprep.subr.mxu0 0.0
      %1019 = vmatpush2.msra.mxu0 0.0
      %1020 = vmatprep.subr.mxu0 0.0
      %1021 = vmatpush2.msra.mxu0 0.0
      %1022 = vmatprep.subr.mxu0 0.0
      %1023 = vmatpush2.msra.mxu0 0.0
      %1024 = vmatprep.subr.mxu0 0.0
      %1025 = vmatpush2.msra.mxu0 0.0
      %1026 = vmatprep.subr.mxu0 0.0
      %1027 = vmatpush2.msra.mxu0 0.0
      %1028 = vmatprep.subr.mxu0 0.0
      %1029 = vmatpush2.msra.mxu0 0.0
      %1030 = vmatprep.subr.mxu0 0.0
      %1031 = vmatpush2.msra.mxu0 0.0
      %1032 = vmatprep.mubr.f32.mxu0 0.0
      %1033 = vmatmul.mubr.f32.gmra.mxu0 %v966
      %v1034 = vpop.f32.mrf.mxu0
      %v1035 = vadd.f32 %v963, %v1034
      %v1036 = vpop.f32.mrf.mxu0
      %1037 = vdwg.mxu0
      %vm1038 = vcmask 7168
      %1039 = vst.msk [vmem:[%s393] sm:$0xff] %vm1038, %v1035
      %p1040 = scmp.lt.s32.totalorder %s25, 1
      %s1041 = scalar_select %p1040, %s25, 1
      %s1042 = smul.addr %s1041, 8
      %s1043 = scalar_lea.vmem %s12, %s1042
      // Predicated region
      $region69: #{tpu_custom_call.1} parent=67 // pred_check
        %p1044 = pneg %p295
      $region70: #{tpu_custom_call.1} parent=67 // pred_check_branch
        %1046 = sbr.rel (%p1044) target = $region72
      $region71: #{tpu_custom_call.1} parent=67 // pred_region
        _
      $region72: #{tpu_custom_call.1} parent=67 // pred_fallthru
        _
    $region68: #{tpu_custom_call.1} parent=5 // pred_fallthru
      _
    %p1047 = scmp.le.s32.totalorder 2, %s20
    // Predicated region
    $region73: #{tpu_custom_call.1} parent=5 // pred_check
      %p1048 = pneg %p1047
    $region74: #{tpu_custom_call.1} parent=5 // pred_check_branch
      %1050 = sbr.rel (%p1048) target = $region76
    $region75: #{tpu_custom_call.1} parent=5 // pred_region
      %s1051 = ssub.s32 %s20, 2
      // Predicated region
      $region77: #{tpu_custom_call.1} parent=75 // pred_check
        %p1052 = pneg %p301
      $region78: #{tpu_custom_call.1} parent=75 // pred_check_branch
        %1054 = sbr.rel (%p1052) target = $region80
      $region79: #{tpu_custom_call.1} parent=75 // pred_region
        %p1055 = scmp.lt.s32.totalorder %s26, 1
        %s1056 = scalar_select %p1055, %s26, 1
        %s1057 = smul.addr %s1056, 8
        %s1058 = scalar_lea.vmem %s12, %s1057
      $region80: #{tpu_custom_call.1} parent=75 // pred_fallthru
        _
    $region76: #{tpu_custom_call.1} parent=5 // pred_fallthru
      _
  $region6: #{tpu_custom_call.1} parent=0 // loop_footer
    %s24 = sadd.s32 1, %s20
  $region7: #{tpu_custom_call.1} parent=0 // loop_footer_branch
    %19 = sbr.rel target = $region3
  $region8: #{tpu_custom_call.1} parent=0 // loop_exit
    _

</llo_original>
